<compile_context>
chip_gen: v7x
topology: tpu7x:2x2x1
jax: 0.10.0
libtpu: 0.0.40
codegen_flags: <defaults>
</compile_context>

<pallas_src>
import jax
import jax.numpy as jnp
from jax.experimental import pallas as pl
from jax.experimental.pallas import tpu as pltpu


def _embed_attention_kernel(x_ref, w_ref, len_ref, out_ref):
    """x_ref: [T,B,A] f32; w_ref: [1,1,A] f32; len_ref: [1,B] i32; out_ref: [T,B] f32."""
    T, B, _ = x_ref.shape
    x = x_ref[...]                                              # [T, B, A]
    w = w_ref[...]                                              # [1, 1, A]

    # att_w projection for every (t, b) in one shot: VPU mul + lane reduce.
    scores = jnp.sum(x * w, axis=-1)                            # [T, B]

    # Validity mask built once from int32 lengths (t < len_s[b]).
    t_idx = jax.lax.broadcasted_iota(jnp.int32, (T, B), 0)      # [T, B]
    valid = t_idx < len_ref[...]                                # [1,B] broadcasts -> [T,B]

    # exp(att) * mask, NaN-safe (inf at a masked slot cannot poison the sum).
    e = jnp.where(valid, jnp.exp(scores), 0.0)                  # [T, B]
    denom = jnp.sum(e, axis=0, keepdims=True) + 1e-4            # [1, B]
    out_ref[...] = e / denom                                    # [T, B]


def embed_attention(x, att_w_weight, len_s):
    """EmbedAttention.forward.

    x:            [T, B, A] float32 (time-major, T == int(len_s[0])).
    att_w_weight: [1, A]    float32 (nn.Linear(att_size, 1, bias=False).weight).
    len_s:        [B]       int     (descending lengths).
    Returns attention weights of shape [T, B, 1] (float32).
    """
    T, B, A = x.shape
    w = att_w_weight.astype(jnp.float32).reshape(1, 1, A)   # free: only unit dims move
    lens = len_s.astype(jnp.int32).reshape(1, B)

    out2d = pl.pallas_call(
        _embed_attention_kernel,
        out_shape=jax.ShapeDtypeStruct((T, B), jnp.float32),
        in_specs=[
            pl.BlockSpec(memory_space=pltpu.MemorySpace.VMEM),  # x
            pl.BlockSpec(memory_space=pltpu.MemorySpace.VMEM),  # att_w weight
            pl.BlockSpec(memory_space=pltpu.MemorySpace.VMEM),  # lengths (int32)
        ],
        out_specs=pl.BlockSpec(memory_space=pltpu.MemorySpace.VMEM),
    )(x.astype(jnp.float32), w, lens)

    # Re-attach the trailing unit dim outside the kernel (pure metadata reshape).
    return out2d[..., None]                                     # [T, B, 1]


if __name__ == "__main__":
    key = jax.random.PRNGKey(0)
    T, B, A = 8, 4, 32                                   # seq, batch, att_size
    kx, kw = jax.random.split(key)
    x = jax.random.normal(kx, (T, B, A), dtype=jnp.float32)
    att_w_weight = 0.1 * jax.random.normal(kw, (1, A), dtype=jnp.float32)
    len_s = jnp.array([8, 6, 5, 2], dtype=jnp.int32)     # len_s[0] == T, sorted desc

    out = jax.jit(embed_attention)(x, att_w_weight, len_s)
    jax.block_until_ready(out)
    assert out.shape == (T, B, 1)

    # Pure-JAX reference of the PyTorch forward.
    att = jnp.einsum('tba,oa->tb', x, att_w_weight)                       # [T, B]
    mask = (jnp.arange(T)[:, None] < len_s[None, :]).astype(jnp.float32)  # [T, B]
    e = jnp.exp(att) * mask
    ref = (e / (e.sum(0, keepdims=True) + 1e-4))[..., None]               # [T, B, 1]

    assert jnp.allclose(out, ref, atol=1e-5, rtol=1e-5), \
        float(jnp.max(jnp.abs(out - ref)))
    # Attention weights over valid positions sum to ~1 per batch column.
    assert jnp.allclose(out[..., 0].sum(0), jnp.ones((B,), jnp.float32), atol=1e-3)

    print("KERNEL_OK")
</pallas_src>

<mosaic_0001>
module attributes {stable_mosaic.version = 11 : i64} {
  func.func @_embed_attention_kernel(%arg0: memref<8x4x32xf32, #tpu.memory_space<vmem>>, %arg1: memref<1x1x32xf32, #tpu.memory_space<vmem>>, %arg2: memref<1x4xi32, #tpu.memory_space<vmem>>, %arg3: memref<8x4xf32, #tpu.memory_space<vmem>>) attributes {dimension_semantics = [], scalar_prefetch = 0 : i64, scratch_operands = 0 : i64, tpu.core_type = #tpu.core_type<tc>} {
    %c0 = arith.constant 0 : index
    %c0_0 = arith.constant 0 : index
    %c0_1 = arith.constant 0 : index
    %0 = vector.load %arg0[%c0, %c0_0, %c0_1] : memref<8x4x32xf32, #tpu.memory_space<vmem>>, vector<8x4x32xf32>
    %c0_2 = arith.constant 0 : index
    %c0_3 = arith.constant 0 : index
    %c0_4 = arith.constant 0 : index
    %1 = vector.load %arg1[%c0_2, %c0_3, %c0_4] : memref<1x1x32xf32, #tpu.memory_space<vmem>>, vector<1x1x32xf32>
    %2 = vector.broadcast %1 : vector<1x1x32xf32> to vector<8x4x32xf32>
    %3 = arith.mulf %0, %2 : vector<8x4x32xf32>
    %cst = arith.constant dense<0.000000e+00> : vector<8x4xf32>
    %4 = vector.multi_reduction <add>, %3, %cst [2] : vector<8x4x32xf32> to vector<8x4xf32>
    %5 = tpu.iota {dimensions = array<i32: 0>} : vector<8x4xi32>
    %c0_5 = arith.constant 0 : index
    %c0_6 = arith.constant 0 : index
    %6 = vector.load %arg2[%c0_5, %c0_6] : memref<1x4xi32, #tpu.memory_space<vmem>>, vector<1x4xi32>
    %7 = vector.broadcast %6 : vector<1x4xi32> to vector<8x4xi32>
    %8 = arith.cmpi slt, %5, %7 : vector<8x4xi32>
    %9 = math.exp %4 : vector<8x4xf32>
    %cst_7 = arith.constant 0.000000e+00 : f32
    %10 = vector.broadcast %cst_7 : f32 to vector<8x4xf32>
    %11 = arith.select %8, %9, %10 : vector<8x4xi1>, vector<8x4xf32>
    %cst_8 = arith.constant dense<0.000000e+00> : vector<4xf32>
    %12 = vector.multi_reduction <add>, %11, %cst_8 [0] : vector<8x4xf32> to vector<4xf32>
    %13 = vector.shape_cast %12 : vector<4xf32> to vector<1x4xf32>
    %cst_9 = arith.constant 9.99999974E-5 : f32
    %14 = vector.broadcast %cst_9 : f32 to vector<1x4xf32>
    %15 = arith.addf %13, %14 : vector<1x4xf32>
    %16 = vector.broadcast %15 : vector<1x4xf32> to vector<8x4xf32>
    %17 = arith.divf %11, %16 : vector<8x4xf32>
    %c0_10 = arith.constant 0 : index
    %c0_11 = arith.constant 0 : index
    %18 = vector.load %arg3[%c0_10, %c0_11] : memref<8x4xf32, #tpu.memory_space<vmem>>, vector<8x4xf32>
    tpu.vector_store %arg3[%c0_10, %c0_11], %17 {strides = array<i32>} : memref<8x4xf32, #tpu.memory_space<vmem>>, vector<8x4xf32>,
    return
  }
}

</mosaic_0001>

<llo_original>
// kernel: embed_attention.1
$region0: #{embed_attention.1}
  #allocation0 [shape = 'u32[]', space=smem, size = 0x4, offset = 0x4, fixed_abs, tag = 'smem constant byte address 0x4 - core index']
  #allocation1 [shape = 'u32[144,128]{1,0:T(1,128)}', space=vmem, size = 0x12000, scoped, tag = 'internal scratch']
  %s0 = inlined_call_operand.hbm [shape: f32[8,4,32], index: 0, kind: input, shape index: {}]
  %s1 = inlined_call_operand.vmem [shape: f32[1,1,32], index: 1, kind: input, shape index: {}]
  %s2 = inlined_call_operand.vmem [shape: s32[1,4], index: 2, kind: input, shape index: {}]
  %s3 = inlined_call_operand.vmem [shape: f32[8,4], index: 3, kind: output, shape index: {}]
  %s4 = sld [smem:[#allocation0]]
  $region26: #{embed_attention.1} parent=0
    _
  %s6 = ssub.s32 1, %s4
  %s7 = scalar_select 0, %s6, %s4
  $region1: #{embed_attention.1} parent=0
    #allocation2 [shape = 'u8[16384]{0}', space=vmem, size = 0x4000, scoped, tag = 'input window, operand 0, single buffered']
    #allocation3 [shape = 's32[1]{0}', space=sflag, size = 0x4, scoped, tag = 'scoped memory for embed_attention.1']
    %8 = vsyncpa [#allocation3], 0
    // Predicated region
    $region2: #{embed_attention.1} parent=1 // pred_check
      _
    $region3: #{embed_attention.1} parent=1 // pred_check_branch
      %10 = sbr.rel (0) target = $region5
    $region4: #{embed_attention.1} parent=1 // pred_region
      %s12 = ssub.s32 512, 512
      %13 = vsyncadd [#allocation3], %s12
      %s14 = sshll.u32 [#allocation2], 4
      %s15 = int_to_ptr.vmem [resolvable:$true] %s14
      %20 = dma.hbm_to_vmem [thread:$0]  %s0, 512, %s15, [#allocation3], 64, 64, 4
    $region5: #{embed_attention.1} parent=1 // pred_fallthru
      _
    // Predicated region
    $region6: #{embed_attention.1} parent=1 // pred_check
      _
    $region7: #{embed_attention.1} parent=1 // pred_check_branch
      %22 = sbr.rel (0) target = $region9
    $region8: #{embed_attention.1} parent=1 // pred_region
      _
    $region9: #{embed_attention.1} parent=1 // pred_fallthru
      _
    // Predicated region
    $region10: #{embed_attention.1} parent=1 // pred_check
      _
    $region11: #{embed_attention.1} parent=1 // pred_check_branch
      %24 = sbr.rel (0) target = $region13
    $region12: #{embed_attention.1} parent=1 // pred_region
      _
    $region13: #{embed_attention.1} parent=1 // pred_fallthru
      _
    // Predicated region
    $region14: #{embed_attention.1} parent=1 // pred_check
      _
    $region15: #{embed_attention.1} parent=1 // pred_check_branch
      %26 = sbr.rel (0) target = $region17
    $region16: #{embed_attention.1} parent=1 // pred_region
      %27 = dma.done [#allocation3], 512
    $region17: #{embed_attention.1} parent=1 // pred_fallthru
      _
    %v28 = vld [vmem:[#allocation2] sm:$0xf]
    %v29 = vld [vmem:[#allocation2 + $0x4] sm:$0xf]
    %v30 = vld [vmem:[#allocation2 + $0x8] sm:$0xf]
    %v31 = vld [vmem:[#allocation2 + $0xc] sm:$0xf]
    %v32 = vld [vmem:[#allocation2 + $0x10] sm:$0xf]
    %v33 = vld [vmem:[#allocation2 + $0x14] sm:$0xf]
    %v34 = vld [vmem:[#allocation2 + $0x18] sm:$0xf]
    %v35 = vld [vmem:[#allocation2 + $0x1c] sm:$0xf]
    %v36 = vld [vmem:[%s1] sm:$0x1]
    %v38 = vlaneseq
    %v39 = vshrl.u32 %v38, 7
    %v40 = vsub.s32 0, %v39
    %v41 = vrot.slane %v36, %v40
    %v43 = vmul.f32 %v28, %v41
    %v44 = vmul.f32 %v29, %v41
    %v45 = vmul.f32 %v30, %v41
    %v46 = vmul.f32 %v31, %v41
    %v47 = vmul.f32 %v32, %v41
    %v48 = vmul.f32 %v33, %v41
    %v49 = vmul.f32 %v34, %v41
    %v50 = vmul.f32 %v35, %v41
    %vm51 = vcmask 257024
    %v52 = vsel %vm51, %v43, 0.0
    %53 = vadd.xlane.f32.xlu0 %v52
    %v54 = vpop.xlane.xlu0 %53
    %v55 = vsel %vm51, %v44, 0.0
    %56 = vadd.xlane.f32.xlu0 %v55
    %v57 = vpop.xlane.xlu0 %56
    %v58 = vsel %vm51, %v45, 0.0
    %59 = vadd.xlane.f32.xlu0 %v58
    %v60 = vpop.xlane.xlu0 %59
    %v61 = vsel %vm51, %v46, 0.0
    %62 = vadd.xlane.f32.xlu0 %v61
    %v63 = vpop.xlane.xlu0 %62
    %v64 = vsel %vm51, %v47, 0.0
    %65 = vadd.xlane.f32.xlu0 %v64
    %v66 = vpop.xlane.xlu0 %65
    %v67 = vsel %vm51, %v48, 0.0
    %68 = vadd.xlane.f32.xlu0 %v67
    %v69 = vpop.xlane.xlu0 %68
    %v70 = vsel %vm51, %v49, 0.0
    %71 = vadd.xlane.f32.xlu0 %v70
    %v72 = vpop.xlane.xlu0 %71
    %v73 = vsel %vm51, %v50, 0.0
    %74 = vadd.xlane.f32.xlu0 %v73
    %v75 = vpop.xlane.xlu0 %74
    %v76 = vlaneseq
    %v77 = vshrl.u32 %v76, 7
    %v78 = vld [vmem:[%s2] sm:$0x1]
    %v79 = vlaneseq
    %v80 = vshrl.u32 %v79, 7
    %v81 = vsub.s32 0, %v80
    %v82 = vrot.slane %v78, %v81
    %vm83 = vcmp.lt.s32.totalorder %v77, %v82
    %v84 = vmul.f32 %v54, 1.442695
    %v85 = vpow.pop %v84
    %v86 = vmul.f32 %v57, 1.442695
    %v87 = vpow.pop %v86
    %v88 = vmul.f32 %v60, 1.442695
    %v89 = vpow.pop %v88
    %v90 = vmul.f32 %v63, 1.442695
    %v91 = vpow.pop %v90
    %v92 = vmul.f32 %v66, 1.442695
    %v93 = vpow.pop %v92
    %v94 = vmul.f32 %v69, 1.442695
    %v95 = vpow.pop %v94
    %v96 = vmul.f32 %v72, 1.442695
    %v97 = vpow.pop %v96
    %v98 = vmul.f32 %v75, 1.442695
    %v99 = vpow.pop %v98
    %v108 = vlaneseq
    %v109 = vand.u32 %v108, 127
    %v110 = vlaneseq
    %v111 = vshrl.u32 %v110, 7
    %v112 = vsub.s32 %v109, %v111
    %v113 = vrot.slane %v85, %v112
    %v114 = vlaneseq
    %v115 = vshrl.u32 %v114, 7
    %v116 = vsub.s32 %v109, %v115
    %v117 = vrot.slane %v87, %v116
    %v118 = vlaneseq
    %v119 = vshrl.u32 %v118, 7
    %v120 = vsub.s32 %v109, %v119
    %v121 = vrot.slane %v89, %v120
    %v122 = vlaneseq
    %v123 = vshrl.u32 %v122, 7
    %v124 = vsub.s32 %v109, %v123
    %v125 = vrot.slane %v91, %v124
    %v126 = vlaneseq
    %v127 = vshrl.u32 %v126, 7
    %v128 = vsub.s32 %v109, %v127
    %v129 = vrot.slane %v93, %v128
    %v130 = vlaneseq
    %v131 = vshrl.u32 %v130, 7
    %v132 = vsub.s32 %v109, %v131
    %v133 = vrot.slane %v95, %v132
    %v134 = vlaneseq
    %v135 = vshrl.u32 %v134, 7
    %v136 = vsub.s32 %v109, %v135
    %v137 = vrot.slane %v97, %v136
    %v138 = vlaneseq
    %v139 = vshrl.u32 %v138, 7
    %v140 = vsub.s32 %v109, %v139
    %v141 = vrot.slane %v99, %v140
    %vm142 = vcmask 1041409
    %v143 = vsel %vm142, %v117, %v113
    %vm144 = vcmask 1042434
    %v145 = vsel %vm144, %v121, %v143
    %vm146 = vcmask 1043459
    %v147 = vsel %vm146, %v125, %v145
    %vm148 = vcmask 1044484
    %v149 = vsel %vm148, %v129, %v147
    %vm150 = vcmask 1045509
    %v151 = vsel %vm150, %v133, %v149
    %vm152 = vcmask 1046534
    %v153 = vsel %vm152, %v137, %v151
    %vm154 = vcmask 1047559
    %v155 = vsel %vm154, %v141, %v153
    %v157 = vsel %vm83, %v155, 0.0
    %vm158 = vcmask 31744
    %v159 = vsel %vm158, %v157, 0.0
    %v160 = vrot.slane %v159, 4
    %v161 = vadd.f32 %v159, %v160
    %v162 = vrot.slane %v161, 2
    %v163 = vadd.f32 %v161, %v162
    %v164 = vrot.slane %v163, 1
    %v165 = vadd.f32 %v163, %v164
    %v166 = vadd.f32 %v165, 0.0001
    %v167 = vrcp.pop %v166
    %v168 = vmul.f32 %v157, %v167
    %169 = vst.msk [vmem:[%s3] sm:$0xff] %vm158, %v168
    // Predicated region
    $region18: #{embed_attention.1} parent=1 // pred_check
      _
    $region19: #{embed_attention.1} parent=1 // pred_check_branch
      %171 = sbr.rel (0) target = $region21
    $region20: #{embed_attention.1} parent=1 // pred_region
      _
    $region21: #{embed_attention.1} parent=1 // pred_fallthru
      _
    // Predicated region
    $region22: #{embed_attention.1} parent=1 // pred_check
      _
    $region23: #{embed_attention.1} parent=1 // pred_check_branch
      %173 = sbr.rel (0) target = $region25
    $region24: #{embed_attention.1} parent=1 // pred_region
      _
    $region25: #{embed_attention.1} parent=1 // pred_fallthru
      _
    %174 = vsyncpa [#allocation3], 1

</llo_original>
